<compile_context>
chip_gen: v5e
topology: v5e:2x2
jax: 0.10.0
libtpu: 0.0.40
codegen_flags: <defaults>
</compile_context>

<pallas_src>
import jax
import jax.numpy as jnp
from jax.experimental import pallas as pl
from jax.experimental.pallas import tpu as pltpu

LANE = 128     # TPU lane width (last dim of a vreg / MXU pass)
SUBLANE = 8    # f32 sublane packing


def _round_up(n, m):
    return ((n + m - 1) // m) * m


def _vmem_capacity_bytes():
    """Physical per-core VMEM; conservative (v7x) fallback if query fails."""
    try:
        return int(pltpu.get_tpu_info().vmem_capacity_bytes)
    except Exception:
        return 64 * 1024 * 1024


def _invariant_spec(shape):
    """BlockSpec for a grid-invariant operand; single-buffered when supported."""
    idx_map = lambda i: (0,) * len(shape)
    if hasattr(pl, "Buffered"):
        try:
            return pl.BlockSpec(shape, idx_map, pipeline_mode=pl.Buffered(1))
        except TypeError:
            pass
    return pl.BlockSpec(shape, idx_map)


# ----------------------------------------------------------------------------
# Kernel
# ----------------------------------------------------------------------------
def resnet_block_kernel(x_ref, w1_ref, b1_ref, w2_ref, b2_ref, o_ref):
    """Fused fc1 -> ReLU -> fc2 -> +residual -> ReLU on one batch tile.

    x_ref : [TM, Hp] f32   (also the residual; re-read at the final add)
    w*_ref: [Hp, Hp] bf16 or f32 (matmul operands; f32 accumulation on MXU)
    b*_ref: [1, Hp]  f32
    o_ref : [TM, Hp] caller dtype
    """
    w1 = w1_ref[...]
    h = jnp.dot(x_ref[...].astype(w1.dtype), w1,
                preferred_element_type=jnp.float32) + b1_ref[...]
    h = jnp.maximum(h, 0.0)
    w2 = w2_ref[...]
    h = jnp.dot(h.astype(w2.dtype), w2,
                preferred_element_type=jnp.float32) + b2_ref[...]
    # Re-read the residual from VMEM instead of keeping it live across both
    # MXU passes (regalloc pressure / spill avoidance).
    o_ref[...] = jnp.maximum(h + x_ref[...], 0.0).astype(o_ref.dtype)


# ----------------------------------------------------------------------------
# One-time parameter preparation (hoisted out of the per-call path)
# ----------------------------------------------------------------------------
def prepare_resnet_block_params(w1_t, b1, w2_t, b2, *, use_bf16=True):
    """Pad + (optionally) bf16-cast the weights ONCE.

    w*_t: [H, H] stored (in, out) == PyTorch weight transposed; b*: [H].
    use_bf16=True quantizes matmul operands to bf16 (MXU-native, f32 accum);
    set use_bf16=False for strict f32 parity with the PyTorch reference.
    Zero-padding keeps semantics exact: padded input cols, weight rows/cols
    and bias entries are 0, so padded outputs are 0 (+residual 0) and sliced
    off by the wrapper.
    """
    H = w1_t.shape[0]
    Hp = _round_up(H, LANE)
    w_dtype = jnp.bfloat16 if use_bf16 else jnp.float32

    w1_p = jnp.zeros((Hp, Hp), w_dtype).at[:H, :H].set(w1_t.astype(w_dtype))
    w2_p = jnp.zeros((Hp, Hp), w_dtype).at[:H, :H].set(w2_t.astype(w_dtype))
    b1_p = jnp.zeros((1, Hp), jnp.float32).at[0, :H].set(
        b1.reshape(-1).astype(jnp.float32))
    b2_p = jnp.zeros((1, Hp), jnp.float32).at[0, :H].set(
        b2.reshape(-1).astype(jnp.float32))
    return (w1_p, b1_p, w2_p, b2_p)


# ----------------------------------------------------------------------------
# Per-call wrapper
# ----------------------------------------------------------------------------
def resnet_block(x, params):
    """x: [B, H]; params: output of prepare_resnet_block_params (already padded)."""
    w1_p, b1_p, w2_p, b2_p = params
    B, H = x.shape
    Hp = w1_p.shape[0]
    out_dtype = x.dtype
    out_itemsize = jnp.dtype(out_dtype).itemsize
    w_itemsize = jnp.dtype(w1_p.dtype).itemsize

    # Batch tile: minimize padded rows. For B <= 256 this is a single grid
    # step (best for tiny H, where the kernel is pure per-step overhead).
    n_tiles = pl.cdiv(B, 256)
    block_m = _round_up(pl.cdiv(B, n_tiles), SUBLANE)
    Bp = n_tiles * block_m

    # Activations are padded per call (cheap: Bp*Hp f32); residual kept in f32.
    x_p = jnp.zeros((Bp, Hp), jnp.float32).at[:B, :H].set(x.astype(jnp.float32))

    # VMEM budget: single-buffered resident weights + biases, double-buffered
    # x/out tiles. Cap at 80% of physical VMEM (generation-aware: 64 MiB on
    # v7x, 128 MiB on v5e/v6e) so Mosaic keeps internal-scratch headroom.
    w_bytes = 2 * Hp * Hp * w_itemsize
    bias_bytes = 2 * Hp * 4
    io_bytes = 2 * block_m * Hp * (4 + out_itemsize)
    need = w_bytes + bias_bytes + io_bytes
    vmem_limit = int(min(max(int(1.25 * need), 16 * 1024 * 1024),
                         int(0.8 * _vmem_capacity_bytes())))

    cost = pl.CostEstimate(
        flops=4 * Bp * Hp * Hp,                       # two [Bp,Hp]x[Hp,Hp] matmuls
        transcendentals=0,
        bytes_accessed=Bp * Hp * 4 + Bp * Hp * out_itemsize
        + w_bytes + bias_bytes,
    )

    out_p = pl.pallas_call(
        resnet_block_kernel,
        out_shape=jax.ShapeDtypeStruct((Bp, Hp), out_dtype),
        grid_spec=pltpu.PrefetchScalarGridSpec(
            num_scalar_prefetch=0,
            grid=(n_tiles,),
            in_specs=[
                pl.BlockSpec((block_m, Hp), lambda i: (i, 0)),  # x: batch-tiled
                _invariant_spec((Hp, Hp)),                      # w1: resident
                _invariant_spec((1, Hp)),                       # b1
                _invariant_spec((Hp, Hp)),                      # w2: resident
                _invariant_spec((1, Hp)),                       # b2
            ],
            out_specs=pl.BlockSpec((block_m, Hp), lambda i: (i, 0)),
        ),
        compiler_params=pltpu.CompilerParams(
            dimension_semantics=("parallel",),   # batch tiles are independent
            vmem_limit_bytes=vmem_limit,
        ),
        cost_estimate=cost,
    )(x_p, w1_p, b1_p, w2_p, b2_p)

    return out_p[:B, :H]


def resnet_block_ref(x, w1_t, b1, w2_t, b2):
    h = jnp.maximum(x @ w1_t + b1, 0.0)
    h = h @ w2_t + b2
    return jnp.maximum(h + x, 0.0)


if __name__ == "__main__":
    key = jax.random.PRNGKey(0)

    def make_params(k, H):
        kw1, kb1, kw2, kb2 = jax.random.split(k, 4)
        bound = 1.0 / (H ** 0.5)
        w1_t = jax.random.uniform(kw1, (H, H), jnp.float32, -bound, bound)
        b1 = jax.random.uniform(kb1, (H,), jnp.float32, -bound, bound)
        w2_t = jax.random.uniform(kw2, (H, H), jnp.float32, -bound, bound)
        b2 = jax.random.uniform(kb2, (H,), jnp.float32, -bound, bound)
        return w1_t, b1, w2_t, b2

    run = jax.jit(resnet_block)

    # (batch, hidden, use_bf16, atol):
    #   (8, 32, True)   : the small shape implied by the module, bf16 fast path
    #   (8, 32, False)  : strict f32 parity path
    #   (384, 160, True): non-aligned shapes -> padding + 2-step batch grid
    cases = [(8, 32, True, 5e-2), (8, 32, False, 1e-5), (384, 160, True, 5e-2)]
    for (B, H, use_bf16, atol) in cases:
        key, kx, kp = jax.random.split(key, 3)
        x = jax.random.normal(kx, (B, H), dtype=jnp.float32)
        w1_t, b1, w2_t, b2 = make_params(kp, H)

        params = prepare_resnet_block_params(w1_t, b1, w2_t, b2,
                                             use_bf16=use_bf16)
        out = jax.block_until_ready(run(x, params))
        ref = resnet_block_ref(x, w1_t, b1, w2_t, b2)

        assert out.shape == (B, H)
        assert out.dtype == x.dtype
        assert jnp.allclose(out, ref, atol=atol, rtol=atol), \
            f"mismatch at {(B, H, use_bf16)}"

    print("KERNEL_OK")
</pallas_src>

<mosaic_0001>
module attributes {stable_mosaic.version = 11 : i64} {
  func.func @resnet_block_kernel(%arg0: i32, %arg1: memref<8x128xf32, #tpu.memory_space<vmem>>, %arg2: memref<128x128xbf16, #tpu.memory_space<vmem>>, %arg3: memref<1x128xf32, #tpu.memory_space<vmem>>, %arg4: memref<128x128xbf16, #tpu.memory_space<vmem>>, %arg5: memref<1x128xf32, #tpu.memory_space<vmem>>, %arg6: memref<8x128xf32, #tpu.memory_space<vmem>>) attributes {dimension_semantics = [#tpu.dimension_semantics<parallel>], iteration_bounds = array<i64: 1>, scalar_prefetch = 0 : i64, scratch_operands = 0 : i64, tpu.core_type = #tpu.core_type<tc>, window_params = [{transform_indices = @transform_0, window_bounds = array<i64: 8, 128>}, {pipeline_mode = #tpu.pipeline_mode<synchronous>, transform_indices = @transform_1, window_bounds = array<i64: 128, 128>}, {pipeline_mode = #tpu.pipeline_mode<synchronous>, transform_indices = @transform_2, window_bounds = array<i64: 1, 128>}, {pipeline_mode = #tpu.pipeline_mode<synchronous>, transform_indices = @transform_3, window_bounds = array<i64: 128, 128>}, {pipeline_mode = #tpu.pipeline_mode<synchronous>, transform_indices = @transform_4, window_bounds = array<i64: 1, 128>}, {transform_indices = @transform_5, window_bounds = array<i64: 8, 128>}]} {
    %c0 = arith.constant 0 : index
    %c0_0 = arith.constant 0 : index
    %0 = vector.load %arg2[%c0, %c0_0] : memref<128x128xbf16, #tpu.memory_space<vmem>>, vector<128x128xbf16>
    %c0_1 = arith.constant 0 : index
    %c0_2 = arith.constant 0 : index
    %1 = vector.load %arg1[%c0_1, %c0_2] : memref<8x128xf32, #tpu.memory_space<vmem>>, vector<8x128xf32>
    %2 = arith.truncf %1 : vector<8x128xf32> to vector<8x128xbf16>
    %cst = arith.constant dense<0.000000e+00> : vector<8x128xf32>
    %3 = tpu.matmul %2, %0, %cst {dimension_numbers = #tpu.dot_dimension_numbers<[1], [0], [0], [1], [0, 0, 1, 1], [], []>} : vector<8x128xbf16>, vector<128x128xbf16>, vector<8x128xf32> -> vector<8x128xf32>
    %c0_3 = arith.constant 0 : index
    %c0_4 = arith.constant 0 : index
    %4 = vector.load %arg3[%c0_3, %c0_4] : memref<1x128xf32, #tpu.memory_space<vmem>>, vector<1x128xf32>
    %5 = vector.broadcast %4 : vector<1x128xf32> to vector<8x128xf32>
    %6 = arith.addf %3, %5 : vector<8x128xf32>
    %cst_5 = arith.constant 0.000000e+00 : f32
    %7 = vector.broadcast %cst_5 : f32 to vector<8x128xf32>
    %8 = arith.maximumf %6, %7 : vector<8x128xf32>
    %c0_6 = arith.constant 0 : index
    %c0_7 = arith.constant 0 : index
    %9 = vector.load %arg4[%c0_6, %c0_7] : memref<128x128xbf16, #tpu.memory_space<vmem>>, vector<128x128xbf16>
    %10 = arith.truncf %8 : vector<8x128xf32> to vector<8x128xbf16>
    %cst_8 = arith.constant dense<0.000000e+00> : vector<8x128xf32>
    %11 = tpu.matmul %10, %9, %cst_8 {dimension_numbers = #tpu.dot_dimension_numbers<[1], [0], [0], [1], [0, 0, 1, 1], [], []>} : vector<8x128xbf16>, vector<128x128xbf16>, vector<8x128xf32> -> vector<8x128xf32>
    %c0_9 = arith.constant 0 : index
    %c0_10 = arith.constant 0 : index
    %12 = vector.load %arg5[%c0_9, %c0_10] : memref<1x128xf32, #tpu.memory_space<vmem>>, vector<1x128xf32>
    %13 = vector.broadcast %12 : vector<1x128xf32> to vector<8x128xf32>
    %14 = arith.addf %11, %13 : vector<8x128xf32>
    %c0_11 = arith.constant 0 : index
    %c0_12 = arith.constant 0 : index
    %15 = vector.load %arg1[%c0_11, %c0_12] : memref<8x128xf32, #tpu.memory_space<vmem>>, vector<8x128xf32>
    %16 = arith.addf %14, %15 : vector<8x128xf32>
    %cst_13 = arith.constant 0.000000e+00 : f32
    %17 = vector.broadcast %cst_13 : f32 to vector<8x128xf32>
    %18 = arith.maximumf %16, %17 : vector<8x128xf32>
    %c0_14 = arith.constant 0 : index
    %c0_15 = arith.constant 0 : index
    %19 = vector.load %arg6[%c0_14, %c0_15] : memref<8x128xf32, #tpu.memory_space<vmem>>, vector<8x128xf32>
    tpu.vector_store %arg6[%c0_14, %c0_15], %18 {strides = array<i32>} : memref<8x128xf32, #tpu.memory_space<vmem>>, vector<8x128xf32>,
    return
  }
  func.func @transform_0(%arg0: i32) -> (i32, i32) {
    %c0_i32 = arith.constant 0 : i32
    %c0_i32_0 = arith.constant 0 : i32
    return %arg0, %c0_i32 : i32, i32
  }
  func.func @transform_1(%arg0: i32) -> (i32, i32) {
    %c0_i32 = arith.constant 0 : i32
    %c0_i32_0 = arith.constant 0 : i32
    %c0_i32_1 = arith.constant 0 : i32
    return %c0_i32, %c0_i32_0 : i32, i32
  }
  func.func @transform_2(%arg0: i32) -> (i32, i32) {
    %c0_i32 = arith.constant 0 : i32
    %c0_i32_0 = arith.constant 0 : i32
    %c0_i32_1 = arith.constant 0 : i32
    return %c0_i32, %c0_i32_0 : i32, i32
  }
  func.func @transform_3(%arg0: i32) -> (i32, i32) {
    %c0_i32 = arith.constant 0 : i32
    %c0_i32_0 = arith.constant 0 : i32
    %c0_i32_1 = arith.constant 0 : i32
    return %c0_i32, %c0_i32_0 : i32, i32
  }
  func.func @transform_4(%arg0: i32) -> (i32, i32) {
    %c0_i32 = arith.constant 0 : i32
    %c0_i32_0 = arith.constant 0 : i32
    %c0_i32_1 = arith.constant 0 : i32
    return %c0_i32, %c0_i32_0 : i32, i32
  }
  func.func @transform_5(%arg0: i32) -> (i32, i32) {
    %c0_i32 = arith.constant 0 : i32
    %c0_i32_0 = arith.constant 0 : i32
    return %arg0, %c0_i32 : i32, i32
  }
}

</mosaic_0001>

<llo_original>
// kernel: resnet_block.1
$region0: #{resnet_block.1}
  #allocation0 [shape = 'u32[]', space=smem, size = 0x4, offset = 0x4, fixed_abs, tag = 'smem constant byte address 0x4 - core index']
  #allocation1 [shape = 'u32[72,128]{1,0:T(1,128)}', space=vmem, size = 0x9000, scoped, tag = 'internal scratch']
  %s0 = inlined_call_operand.vmem [shape: f32[8,128], index: 0, kind: input, shape index: {}]
  %s1 = inlined_call_operand.hbm [shape: bf16[128,128], index: 1, kind: input, shape index: {}]
  %s2 = inlined_call_operand.vmem [shape: f32[1,128], index: 2, kind: input, shape index: {}]
  %s3 = inlined_call_operand.hbm [shape: bf16[128,128], index: 3, kind: input, shape index: {}]
  %s4 = inlined_call_operand.vmem [shape: f32[1,128], index: 4, kind: input, shape index: {}]
  %s5 = inlined_call_operand.hbm [shape: f32[8,128], index: 5, kind: output, shape index: {}]
  %s6 = sld [smem:[#allocation0]]
  $region38: #{resnet_block.1} parent=0
    _
  %s8 = ssub.s32 1, %s6
  %s9 = scalar_select 0, %s8, %s6
  $region1: #{resnet_block.1} parent=0
    #allocation2 [shape = 'u8[32768]{0}', space=vmem, size = 0x8000, scoped, tag = 'input window, operand 1, single buffered']
    #allocation3 [shape = 's32[1]{0}', space=sflag, size = 0x4, scoped, tag = 'scoped memory for resnet_block.1']
    #allocation4 [shape = 's32[1]{0}', space=sflag, size = 0x4, scoped, tag = 'scoped memory for resnet_block.1']
    #allocation5 [shape = 'u8[32768]{0}', space=vmem, size = 0x8000, scoped, tag = 'input window, operand 3, single buffered']
    #allocation6 [shape = 's32[1]{0}', space=sflag, size = 0x4, scoped, tag = 'scoped memory for resnet_block.1']
    #allocation7 [shape = 'u8[4096]{0}', space=vmem, size = 0x1000, scoped, tag = 'output window, operand 0, single buffered']
    %10 = vsyncpa [#allocation3], 0
    %11 = vsyncpa [#allocation6], 0
    %12 = vsyncpa [#allocation4], 0
    // Predicated region
    $region2: #{resnet_block.1} parent=1 // pred_check
      _
    $region3: #{resnet_block.1} parent=1 // pred_check_branch
      %14 = sbr.rel (0) target = $region5
    $region4: #{resnet_block.1} parent=1 // pred_region
      _
    $region5: #{resnet_block.1} parent=1 // pred_fallthru
      _
    // Predicated region
    $region6: #{resnet_block.1} parent=1 // pred_check
      _
    $region7: #{resnet_block.1} parent=1 // pred_check_branch
      %16 = sbr.rel (0) target = $region9
    $region8: #{resnet_block.1} parent=1 // pred_region
      %18 = vsyncadd [#allocation3], 0
      %s19 = sshll.u32 %s1, 4
      %s20 = int_to_ptr.hbm [resolvable:$true] %s19
      %s21 = sshll.u32 [#allocation2], 4
      %s22 = int_to_ptr.vmem [resolvable:$true] %s21
      %27 = dma.hbm_to_vmem [thread:$0]  %s20, 1024, %s22, [#allocation3], 64, 64, 4
    $region9: #{resnet_block.1} parent=1 // pred_fallthru
      _
    // Predicated region
    $region10: #{resnet_block.1} parent=1 // pred_check
      _
    $region11: #{resnet_block.1} parent=1 // pred_check_branch
      %29 = sbr.rel (0) target = $region13
    $region12: #{resnet_block.1} parent=1 // pred_region
      _
    $region13: #{resnet_block.1} parent=1 // pred_fallthru
      _
    // Predicated region
    $region14: #{resnet_block.1} parent=1 // pred_check
      _
    $region15: #{resnet_block.1} parent=1 // pred_check_branch
      %31 = sbr.rel (0) target = $region17
    $region16: #{resnet_block.1} parent=1 // pred_region
      %33 = vsyncadd [#allocation6], 0
      %s34 = sshll.u32 %s3, 4
      %s35 = int_to_ptr.hbm [resolvable:$true] %s34
      %s36 = sshll.u32 [#allocation5], 4
      %s37 = int_to_ptr.vmem [resolvable:$true] %s36
      %42 = dma.hbm_to_vmem [thread:$0]  %s35, 1024, %s37, [#allocation6], 64, 64, 4
    $region17: #{resnet_block.1} parent=1 // pred_fallthru
      _
    // Predicated region
    $region18: #{resnet_block.1} parent=1 // pred_check
      _
    $region19: #{resnet_block.1} parent=1 // pred_check_branch
      %44 = sbr.rel (0) target = $region21
    $region20: #{resnet_block.1} parent=1 // pred_region
      _
    $region21: #{resnet_block.1} parent=1 // pred_fallthru
      _
    // Predicated region
    $region22: #{resnet_block.1} parent=1 // pred_check
      _
    $region23: #{resnet_block.1} parent=1 // pred_check_branch
      %46 = sbr.rel (0) target = $region25
    $region24: #{resnet_block.1} parent=1 // pred_region
      %48 = dma.done [#allocation3], 1024
    $region25: #{resnet_block.1} parent=1 // pred_fallthru
      _
    // Predicated region
    $region26: #{resnet_block.1} parent=1 // pred_check
      _
    $region27: #{resnet_block.1} parent=1 // pred_check_branch
      %50 = sbr.rel (0) target = $region29
    $region28: #{resnet_block.1} parent=1 // pred_region
      %52 = dma.done [#allocation6], 1024
    $region29: #{resnet_block.1} parent=1 // pred_fallthru
      _
    %v53 = vld [vmem:[#allocation2] sm:$0xf]
    %v54 = vld [vmem:[#allocation2 + $0x4] sm:$0xf]
    %v55 = vld [vmem:[#allocation2 + $0x8] sm:$0xf]
    %v56 = vld [vmem:[#allocation2 + $0xc] sm:$0xf]
    %v57 = vld [vmem:[#allocation2 + $0x10] sm:$0xf]
    %v58 = vld [vmem:[#allocation2 + $0x14] sm:$0xf]
    %v59 = vld [vmem:[#allocation2 + $0x18] sm:$0xf]
    %v60 = vld [vmem:[#allocation2 + $0x1c] sm:$0xf]
    %v61 = vld [vmem:[#allocation2 + $0x20] sm:$0xf]
    %v62 = vld [vmem:[#allocation2 + $0x24] sm:$0xf]
    %v63 = vld [vmem:[#allocation2 + $0x28] sm:$0xf]
    %v64 = vld [vmem:[#allocation2 + $0x2c] sm:$0xf]
    %v65 = vld [vmem:[#allocation2 + $0x30] sm:$0xf]
    %v66 = vld [vmem:[#allocation2 + $0x34] sm:$0xf]
    %v67 = vld [vmem:[#allocation2 + $0x38] sm:$0xf]
    %v68 = vld [vmem:[#allocation2 + $0x3c] sm:$0xf]
    %v69 = vld [vmem:[%s0] sm:$0xff]
    %v70 = vpack.c.bf16 %v69, %v69
    %v71 = vld [vmem:[%s2] sm:$0x1]
    %v73 = vperm.slane %v71, 0
    %v91 = vunpack.c.l.b16 %v53
    %v92 = vunpack.c.l.b16 %v54
    %v93 = vunpack.c.l.b16 %v55
    %v94 = vunpack.c.l.b16 %v56
    %v95 = vunpack.c.l.b16 %v57
    %v96 = vunpack.c.l.b16 %v58
    %v97 = vunpack.c.l.b16 %v59
    %v98 = vunpack.c.l.b16 %v60
    %v99 = vunpack.c.l.b16 %v61
    %v100 = vunpack.c.l.b16 %v62
    %v101 = vunpack.c.l.b16 %v63
    %v102 = vunpack.c.l.b16 %v64
    %v103 = vunpack.c.l.b16 %v65
    %v104 = vunpack.c.l.b16 %v66
    %v105 = vunpack.c.l.b16 %v67
    %v106 = vunpack.c.l.b16 %v68
    %v107 = vpack.c.b16 %v92, %v91
    %v108 = vpack.c.b16 %v94, %v93
    %v109 = vpack.c.b16 %v96, %v95
    %v110 = vpack.c.b16 %v98, %v97
    %v111 = vpack.c.b16 %v100, %v99
    %v112 = vpack.c.b16 %v102, %v101
    %v113 = vpack.c.b16 %v104, %v103
    %v114 = vpack.c.b16 %v106, %v105
    %123 = vmatpush.bf16.msra.mxu0 %v114
    %124 = vmatpush.bf16.msra.mxu0 %v113
    %125 = vmatpush.bf16.msra.mxu0 %v112
    %126 = vmatpush.bf16.msra.mxu0 %v111
    %127 = vmatpush.bf16.msra.mxu0 %v110
    %128 = vmatpush.bf16.msra.mxu0 %v109
    %129 = vmatpush.bf16.msra.mxu0 %v108
    %130 = vmatpush.bf16.msra.mxu0 %v107
    %131 = vmatmul.bf16.gmra.mxu0 %v70
    %v132 = vpop.f32.mrf.mxu0
    %v133 = vadd.f32 %v73, %v132
    %v134 = vpop.f32.mrf.mxu0
    %135 = vdwg.mxu0
    %v136 = vmax.f32 %v133, 0.0
    %v137 = vld [vmem:[#allocation5] sm:$0xf]
    %v138 = vld [vmem:[#allocation5 + $0x4] sm:$0xf]
    %v139 = vld [vmem:[#allocation5 + $0x8] sm:$0xf]
    %v140 = vld [vmem:[#allocation5 + $0xc] sm:$0xf]
    %v141 = vld [vmem:[#allocation5 + $0x10] sm:$0xf]
    %v142 = vld [vmem:[#allocation5 + $0x14] sm:$0xf]
    %v143 = vld [vmem:[#allocation5 + $0x18] sm:$0xf]
    %v144 = vld [vmem:[#allocation5 + $0x1c] sm:$0xf]
    %v145 = vld [vmem:[#allocation5 + $0x20] sm:$0xf]
    %v146 = vld [vmem:[#allocation5 + $0x24] sm:$0xf]
    %v147 = vld [vmem:[#allocation5 + $0x28] sm:$0xf]
    %v148 = vld [vmem:[#allocation5 + $0x2c] sm:$0xf]
    %v149 = vld [vmem:[#allocation5 + $0x30] sm:$0xf]
    %v150 = vld [vmem:[#allocation5 + $0x34] sm:$0xf]
    %v151 = vld [vmem:[#allocation5 + $0x38] sm:$0xf]
    %v152 = vld [vmem:[#allocation5 + $0x3c] sm:$0xf]
    %v153 = vpack.c.bf16 %v136, %v136
    %v154 = vld [vmem:[%s4] sm:$0x1]
    %v156 = vperm.slane %v154, 0
    %v174 = vunpack.c.l.b16 %v137
    %v175 = vunpack.c.l.b16 %v138
    %v176 = vunpack.c.l.b16 %v139
    %v177 = vunpack.c.l.b16 %v140
    %v178 = vunpack.c.l.b16 %v141
    %v179 = vunpack.c.l.b16 %v142
    %v180 = vunpack.c.l.b16 %v143
    %v181 = vunpack.c.l.b16 %v144
    %v182 = vunpack.c.l.b16 %v145
    %v183 = vunpack.c.l.b16 %v146
    %v184 = vunpack.c.l.b16 %v147
    %v185 = vunpack.c.l.b16 %v148
    %v186 = vunpack.c.l.b16 %v149
    %v187 = vunpack.c.l.b16 %v150
    %v188 = vunpack.c.l.b16 %v151
    %v189 = vunpack.c.l.b16 %v152
    %v190 = vpack.c.b16 %v175, %v174
    %v191 = vpack.c.b16 %v177, %v176
    %v192 = vpack.c.b16 %v179, %v178
    %v193 = vpack.c.b16 %v181, %v180
    %v194 = vpack.c.b16 %v183, %v182
    %v195 = vpack.c.b16 %v185, %v184
    %v196 = vpack.c.b16 %v187, %v186
    %v197 = vpack.c.b16 %v189, %v188
    %206 = vmatpush.bf16.msra.mxu0 %v197
    %207 = vmatpush.bf16.msra.mxu0 %v196
    %208 = vmatpush.bf16.msra.mxu0 %v195
    %209 = vmatpush.bf16.msra.mxu0 %v194
    %210 = vmatpush.bf16.msra.mxu0 %v193
    %211 = vmatpush.bf16.msra.mxu0 %v192
    %212 = vmatpush.bf16.msra.mxu0 %v191
    %213 = vmatpush.bf16.msra.mxu0 %v190
    %214 = vmatmul.bf16.gmra.mxu0 %v153
    %v215 = vpop.f32.mrf.mxu0
    %v216 = vadd.f32 %v156, %v215
    %v217 = vpop.f32.mrf.mxu0
    %218 = vdwg.mxu0
    %v219 = vadd.f32 %v216, %v69
    %v220 = vmax.f32 %v219, 0.0
    %221 = vst [vmem:[#allocation7] sm:$0xff] %v220
    // Predicated region
    $region30: #{resnet_block.1} parent=1 // pred_check
      _
    $region31: #{resnet_block.1} parent=1 // pred_check_branch
      %223 = sbr.rel (0) target = $region33
    $region32: #{resnet_block.1} parent=1 // pred_region
      %225 = vsyncadd [#allocation4], 0
      %s227 = sshll.u32 [#allocation7], 4
      %s228 = int_to_ptr.vmem [resolvable:$true] %s227
      %s229 = sshll.u32 %s5, 4
      %s230 = int_to_ptr.hbm [resolvable:$true] %s229
      %232 = dma.vmem_to_hbm [thread:$0]  %s228, 128, %s230, [#allocation4]
    $region33: #{resnet_block.1} parent=1 // pred_fallthru
      _
    // Predicated region
    $region34: #{resnet_block.1} parent=1 // pred_check
      _
    $region35: #{resnet_block.1} parent=1 // pred_check_branch
      %234 = sbr.rel (0) target = $region37
    $region36: #{resnet_block.1} parent=1 // pred_region
      %236 = dma.done [#allocation4], 128
    $region37: #{resnet_block.1} parent=1 // pred_fallthru
      _
    %237 = vsyncpa [#allocation3], 1
    %238 = vsyncpa [#allocation6], 1
    %239 = vsyncpa [#allocation4], 1

</llo_original>
